<compile_context>
chip_gen: v7x
topology: tpu7x:2x2x1
jax: 0.10.0
libtpu: 0.0.40
codegen_flags: <defaults>
</compile_context>

<pallas_src>
import jax
import jax.numpy as jnp
from jax.experimental import pallas as pl
from jax.experimental.pallas import tpu as pltpu


def _round_up(x, m):
    return ((x + m - 1) // m) * m


def _rating_pred_kernel(ufea_ref, ifea_ref, bias_ref, out_ref):
    # ufea_ref / ifea_ref : (TB, D)  native dtype
    # bias_ref            : (TB, 1)  f32   (uoff + ioff + goff, pre-folded)
    # out_ref             : (TB, 1)  f32
    u = ufea_ref[...].astype(jnp.float32)            # in-kernel upcast (VPU)
    v = ifea_ref[...].astype(jnp.float32)
    raw = jnp.sum(u * v, axis=1, keepdims=True)      # (TB, 1) lane reduce (XLU)
    out_ref[...] = raw + bias_ref[...]               # single VPU add


def _pure_jax_rating_pred(batch_userFea, batch_itemFea, bias):
    raw = jnp.sum(batch_userFea.astype(jnp.float32) *
                  batch_itemFea.astype(jnp.float32), axis=1, keepdims=True)
    return raw + bias


def dense_cnn_rating_pred(batch_userFea, batch_itemFea, batch_uid, batch_iid,
                          uid_userOffset, iid_itemOffset, globalOffset,
                          *, block_b=1024, use_pallas=None):
    """JAX wrapper reproducing DenseCNN_RatingPred.forward.

    batch_userFea / batch_itemFea : (B, D) float (any float dtype)
    batch_uid / batch_iid         : (B,)   int32
    uid_userOffset                : (num_users, 1) float32
    iid_itemOffset                : (num_items, 1) float32
    globalOffset                  : (1,)   float32
    returns                       : (B, 1) float32
    """
    B, D = batch_userFea.shape

    # --- bias glue: two tiny gathers + adds, folded into one (B, 1) stream ---
    uoff = jnp.take(uid_userOffset[:, 0], batch_uid, axis=0)     # (B,)
    ioff = jnp.take(iid_itemOffset[:, 0], batch_iid, axis=0)     # (B,)
    bias = (uoff + ioff + globalOffset[0]).astype(jnp.float32)   # (B,)
    bias = bias.reshape(B, 1)

    # Small batches: the pallas_call fixed cost dominates -> pure-JAX path.
    if use_pallas is None:
        use_pallas = B >= 1024
    if not use_pallas:
        return _pure_jax_rating_pred(batch_userFea, batch_itemFea, bias)

    # --- tile-size selection ---
    # 2 feature inputs x 2 pipeline buffers of (tb, D) must stay well below
    # the scoped-VMEM default (32 MiB) -> budget ~8 MiB for the feature tiles.
    itemsize = jnp.dtype(batch_userFea.dtype).itemsize
    vmem_budget = 8 * 1024 * 1024
    tb_cap = max(8, (vmem_budget // (4 * D * itemsize)) // 8 * 8)
    tb = min(block_b, _round_up(B, 8), tb_cap)
    tb = max(8, (tb // 8) * 8)                        # sublane-aligned

    # Pad the batch axis up to a multiple of tb (at most tb-1 rows).
    b_pad = _round_up(B, tb)
    ufea = batch_userFea
    ifea = batch_itemFea
    if b_pad != B:
        pad = b_pad - B
        ufea = jnp.pad(ufea, ((0, pad), (0, 0)))
        ifea = jnp.pad(ifea, ((0, pad), (0, 0)))
        bias = jnp.pad(bias, ((0, pad), (0, 0)))

    grid = (b_pad // tb,)
    out = pl.pallas_call(
        _rating_pred_kernel,
        out_shape=jax.ShapeDtypeStruct((b_pad, 1), jnp.float32),
        grid_spec=pltpu.PrefetchScalarGridSpec(
            num_scalar_prefetch=0,
            grid=grid,
            in_specs=[
                pl.BlockSpec((tb, D), lambda i: (i, 0)),   # userFea tile
                pl.BlockSpec((tb, D), lambda i: (i, 0)),   # itemFea tile
                pl.BlockSpec((tb, 1), lambda i: (i, 0)),   # folded bias tile
            ],
            out_specs=pl.BlockSpec((tb, 1), lambda i: (i, 0)),
        ),
        compiler_params=pltpu.CompilerParams(
            dimension_semantics=("parallel",)),            # 2 TCs on v7x
    )(ufea, ifea, bias)

    return out[:B]


def _reference(batch_userFea, batch_itemFea, batch_uid, batch_iid,
               uid_userOffset, iid_itemOffset, globalOffset):
    uoff = jnp.take(uid_userOffset, batch_uid, axis=0)
    ioff = jnp.take(iid_itemOffset, batch_iid, axis=0)
    raw = jnp.sum(batch_userFea.astype(jnp.float32) *
                  batch_itemFea.astype(jnp.float32), axis=1, keepdims=True)
    return raw + uoff + ioff + globalOffset


def _run_case(key, B, D, num_users, num_items, block_b):
    k1, k2, k3, k4, k5, k6 = jax.random.split(key, 6)
    batch_userFea = jax.random.normal(k1, (B, D), dtype=jnp.float32)
    batch_itemFea = jax.random.normal(k2, (B, D), dtype=jnp.float32)
    batch_uid = jax.random.randint(k3, (B,), 0, num_users, dtype=jnp.int32)
    batch_iid = jax.random.randint(k4, (B,), 0, num_items, dtype=jnp.int32)
    # Module __init__ fills these with 0; use small non-zero values so the
    # bias-add path is actually exercised.
    uid_userOffset = 0.01 * jax.random.normal(k5, (num_users, 1), dtype=jnp.float32)
    iid_itemOffset = 0.01 * jax.random.normal(k6, (num_items, 1), dtype=jnp.float32)
    globalOffset = jnp.array([0.05], dtype=jnp.float32)

    out = dense_cnn_rating_pred(batch_userFea, batch_itemFea, batch_uid,
                                batch_iid, uid_userOffset, iid_itemOffset,
                                globalOffset, block_b=block_b,
                                use_pallas=True)      # force the Pallas path
    out = jax.block_until_ready(out)
    ref = _reference(batch_userFea, batch_itemFea, batch_uid, batch_iid,
                     uid_userOffset, iid_itemOffset, globalOffset)
    assert out.shape == (B, 1), out.shape
    assert jnp.allclose(out, ref, atol=1e-5, rtol=1e-5), (out, ref)


if __name__ == "__main__":
    key = jax.random.PRNGKey(0)
    kA, kB = jax.random.split(key)

    # Small, forward-consistent shapes: batch=2, output_size=32.
    _run_case(kA, B=2, D=32, num_users=8, num_items=8, block_b=1024)

    # Ragged batch -> multiple grid steps + sublane padding.
    _run_case(kB, B=300, D=32, num_users=16, num_items=16, block_b=128)

    print("KERNEL_OK")
</pallas_src>

<mosaic_0001>
module attributes {stable_mosaic.version = 11 : i64} {
  func.func @_rating_pred_kernel(%arg0: i32, %arg1: memref<8x32xf32, #tpu.memory_space<vmem>>, %arg2: memref<8x32xf32, #tpu.memory_space<vmem>>, %arg3: memref<8x1xf32, #tpu.memory_space<vmem>>, %arg4: memref<8x1xf32, #tpu.memory_space<vmem>>) attributes {dimension_semantics = [#tpu.dimension_semantics<parallel>], iteration_bounds = array<i64: 1>, scalar_prefetch = 0 : i64, scratch_operands = 0 : i64, tpu.core_type = #tpu.core_type<tc>, window_params = [{transform_indices = @transform_0, window_bounds = array<i64: 8, 32>}, {transform_indices = @transform_1, window_bounds = array<i64: 8, 32>}, {transform_indices = @transform_2, window_bounds = array<i64: 8, 1>}, {transform_indices = @transform_3, window_bounds = array<i64: 8, 1>}]} {
    %c0 = arith.constant 0 : index
    %c0_0 = arith.constant 0 : index
    %0 = vector.load %arg1[%c0, %c0_0] : memref<8x32xf32, #tpu.memory_space<vmem>>, vector<8x32xf32>
    %c0_1 = arith.constant 0 : index
    %c0_2 = arith.constant 0 : index
    %1 = vector.load %arg2[%c0_1, %c0_2] : memref<8x32xf32, #tpu.memory_space<vmem>>, vector<8x32xf32>
    %2 = arith.mulf %0, %1 : vector<8x32xf32>
    %cst = arith.constant dense<0.000000e+00> : vector<8xf32>
    %3 = vector.multi_reduction <add>, %2, %cst [1] : vector<8x32xf32> to vector<8xf32>
    %4 = vector.shape_cast %3 : vector<8xf32> to vector<8x1xf32>
    %c0_3 = arith.constant 0 : index
    %c0_4 = arith.constant 0 : index
    %5 = vector.load %arg3[%c0_3, %c0_4] : memref<8x1xf32, #tpu.memory_space<vmem>>, vector<8x1xf32>
    %6 = arith.addf %4, %5 : vector<8x1xf32>
    %c0_5 = arith.constant 0 : index
    %c0_6 = arith.constant 0 : index
    %7 = vector.load %arg4[%c0_5, %c0_6] : memref<8x1xf32, #tpu.memory_space<vmem>>, vector<8x1xf32>
    tpu.vector_store %arg4[%c0_5, %c0_6], %6 {strides = array<i32>} : memref<8x1xf32, #tpu.memory_space<vmem>>, vector<8x1xf32>,
    return
  }
  func.func @transform_0(%arg0: i32) -> (i32, i32) {
    %c0_i32 = arith.constant 0 : i32
    %c0_i32_0 = arith.constant 0 : i32
    return %arg0, %c0_i32 : i32, i32
  }
  func.func @transform_1(%arg0: i32) -> (i32, i32) {
    %c0_i32 = arith.constant 0 : i32
    %c0_i32_0 = arith.constant 0 : i32
    return %arg0, %c0_i32 : i32, i32
  }
  func.func @transform_2(%arg0: i32) -> (i32, i32) {
    %c0_i32 = arith.constant 0 : i32
    %c0_i32_0 = arith.constant 0 : i32
    return %arg0, %c0_i32 : i32, i32
  }
  func.func @transform_3(%arg0: i32) -> (i32, i32) {
    %c0_i32 = arith.constant 0 : i32
    %c0_i32_0 = arith.constant 0 : i32
    return %arg0, %c0_i32 : i32, i32
  }
}

</mosaic_0001>

<llo_original>
// kernel: tpu_custom_call.1
$region0: #{tpu_custom_call.1}
  #allocation0 [shape = 'u32[]', space=smem, size = 0x4, offset = 0x4, fixed_abs, tag = 'smem constant byte address 0x4 - core index']
  #allocation1 [shape = 'u32[144,128]{1,0:T(1,128)}', space=vmem, size = 0x12000, scoped, tag = 'internal scratch']
  %s0 = inlined_call_operand.vmem [shape: f32[8,32], index: 0, kind: input, shape index: {}]
  %s1 = inlined_call_operand.hbm [shape: f32[8,32], index: 1, kind: input, shape index: {}]
  %s2 = inlined_call_operand.vmem [shape: f32[8,1], index: 2, kind: input, shape index: {}]
  %s3 = inlined_call_operand.vmem [shape: f32[8,1], index: 3, kind: output, shape index: {}]
  %s4 = sld [smem:[#allocation0]]
  $region26: #{tpu_custom_call.1} parent=0
    _
  %s6 = ssub.s32 1, %s4
  %s7 = scalar_select 0, %s6, %s4
  $region1: #{tpu_custom_call.1} parent=0
    #allocation2 [shape = 'u8[4096]{0}', space=vmem, size = 0x1000, scoped, tag = 'input window, operand 1, single buffered']
    #allocation3 [shape = 's32[1]{0}', space=sflag, size = 0x4, scoped, tag = 'scoped memory for tpu_custom_call.1']
    %8 = vsyncpa [#allocation3], 0
    // Predicated region
    $region2: #{tpu_custom_call.1} parent=1 // pred_check
      _
    $region3: #{tpu_custom_call.1} parent=1 // pred_check_branch
      %10 = sbr.rel (0) target = $region5
    $region4: #{tpu_custom_call.1} parent=1 // pred_region
      _
    $region5: #{tpu_custom_call.1} parent=1 // pred_fallthru
      _
    // Predicated region
    $region6: #{tpu_custom_call.1} parent=1 // pred_check
      _
    $region7: #{tpu_custom_call.1} parent=1 // pred_check_branch
      %12 = sbr.rel (0) target = $region9
    $region8: #{tpu_custom_call.1} parent=1 // pred_region
      %s14 = ssub.s32 128, 128
      %15 = vsyncadd [#allocation3], %s14
      %s17 = sshll.u32 [#allocation2], 4
      %s18 = int_to_ptr.vmem [resolvable:$true] %s17
      %20 = dma.hbm_to_vmem [thread:$0]  %s1, 128, %s18, [#allocation3]
    $region9: #{tpu_custom_call.1} parent=1 // pred_fallthru
      _
    // Predicated region
    $region10: #{tpu_custom_call.1} parent=1 // pred_check
      _
    $region11: #{tpu_custom_call.1} parent=1 // pred_check_branch
      %22 = sbr.rel (0) target = $region13
    $region12: #{tpu_custom_call.1} parent=1 // pred_region
      _
    $region13: #{tpu_custom_call.1} parent=1 // pred_fallthru
      _
    // Predicated region
    $region14: #{tpu_custom_call.1} parent=1 // pred_check
      _
    $region15: #{tpu_custom_call.1} parent=1 // pred_check_branch
      %24 = sbr.rel (0) target = $region17
    $region16: #{tpu_custom_call.1} parent=1 // pred_region
      %25 = dma.done [#allocation3], 128
    $region17: #{tpu_custom_call.1} parent=1 // pred_fallthru
      _
    %v26 = vld [vmem:[%s0] sm:$0xff]
    %v27 = vld [vmem:[#allocation2] sm:$0xff]
    %v28 = vmul.f32 %v26, %v27
    %vm29 = vcmask 261120
    %v30 = vsel %vm29, %v28, 0.0
    %31 = vadd.xlane.f32.xlu0 %v30
    %v32 = vpop.xlane.xlu0 %31
    %v33 = vld [vmem:[%s2] sm:$0xff]
    %v34 = vadd.f32 %v32, %v33
    %vm35 = vcmask 7168
    %36 = vst.msk [vmem:[%s3] sm:$0xff] %vm35, %v34
    // Predicated region
    $region18: #{tpu_custom_call.1} parent=1 // pred_check
      _
    $region19: #{tpu_custom_call.1} parent=1 // pred_check_branch
      %38 = sbr.rel (0) target = $region21
    $region20: #{tpu_custom_call.1} parent=1 // pred_region
      _
    $region21: #{tpu_custom_call.1} parent=1 // pred_fallthru
      _
    // Predicated region
    $region22: #{tpu_custom_call.1} parent=1 // pred_check
      _
    $region23: #{tpu_custom_call.1} parent=1 // pred_check_branch
      %40 = sbr.rel (0) target = $region25
    $region24: #{tpu_custom_call.1} parent=1 // pred_region
      _
    $region25: #{tpu_custom_call.1} parent=1 // pred_fallthru
      _
    %41 = vsyncpa [#allocation3], 1

</llo_original>
